<compile_context>
chip_gen: v7x
topology: tpu7x:2x2x1
jax: 0.10.0
libtpu: 0.0.40
codegen_flags: <defaults>
</compile_context>

<pallas_src>
import functools

import jax
import jax.numpy as jnp
from jax import lax
from jax.experimental import pallas as pl
from jax.experimental.pallas import tpu as pltpu

LANES = 128
SUBLANES = 8
_LOG_CLAMP = -100.0  # PyTorch nn.BCELoss clamps each log term at -100.


def _round_up(x, m):
    return ((x + m - 1) // m) * m


def _min_sublane_multiple(dtype):
    # Min tile is (8,128) for 4-byte, (16,128) for 2-byte, (32,128) for 1-byte.
    return {1: 32, 2: 16}.get(jnp.dtype(dtype).itemsize, SUBLANES)


def _default_num_cores():
    """v7x has 2 TensorCores per chip; v5e/v6e (and older) expose 1."""
    try:
        kind = jax.devices()[0].device_kind.lower()
    except Exception:
        return 1
    return 2 if ("v7" in kind or "7x" in kind) else 1


def _partial_sums_kernel(count_ref, p_ref, t_ref, inter_ref, union_ref, bce_ref,
                         *, tile_rows, chunk_rows, num_tiles, hard_targets):
    """Accumulates per-lane partial sums of p*t, p+t and the BCE elementwise term.

    count_ref: (1,) int32 in SMEM -- number of valid (unpadded) elements.
    p_ref/t_ref: (tile_rows, 128) tile of probabilities / targets (native dtype).
    inter_ref/union_ref/bce_ref: (8, 128) f32 accumulators, VMEM-resident across
    the inner (arbitrary) grid axis.
    """
    c = pl.program_id(0)
    t_idx = pl.program_id(1)

    @pl.when(t_idx == 0)
    def _init():
        inter_ref[...] = jnp.zeros_like(inter_ref)
        union_ref[...] = jnp.zeros_like(union_ref)
        bce_ref[...] = jnp.zeros_like(bce_ref)

    count = count_ref[0]
    tile_elems = tile_rows * LANES
    tile_start = (c * num_tiles + t_idx) * tile_elems  # logical element offset
    n_chunks = tile_rows // chunk_rows

    def _accumulate(masked):
        def chunk_body(ci, carry):
            inter, union, bce = carry
            r0 = pl.multiple_of(ci * chunk_rows, chunk_rows)
            p = p_ref[pl.ds(r0, chunk_rows), :].astype(jnp.float32)
            t = t_ref[pl.ds(r0, chunk_rows), :].astype(jnp.float32)
            if masked:
                # Mask slots past the valid element count (also neutralizes any
                # unspecified data in partial / clamped edge blocks).
                row_iota = lax.broadcasted_iota(jnp.int32, (chunk_rows, LANES), 0)
                lane_iota = lax.broadcasted_iota(jnp.int32, (chunk_rows, LANES), 1)
                gidx = tile_start + (r0 + row_iota) * LANES + lane_iota
                valid = gidx < count
                p = jnp.where(valid, p, 0.0)
                t = jnp.where(valid, t, 0.0)
            # (chunk,128) -> (chunk//8, 8, 128): same vreg layout (free); the
            # axis-0 reductions below are plain vreg adds on the VPU (no XLU).
            p3 = p.reshape(chunk_rows // SUBLANES, SUBLANES, LANES)
            t3 = t.reshape(chunk_rows // SUBLANES, SUBLANES, LANES)
            inter = inter + jnp.sum(p3 * t3, axis=0)
            union = union + jnp.sum(p3 + t3, axis=0)
            if hard_targets:
                # Opt-in single-log variant: only valid for targets in {0,1}.
                sel = jnp.where(t3 > 0.5, p3, 1.0 - p3)
                pos = jnp.maximum(jnp.log(sel), _LOG_CLAMP)
            else:
                # t*log(p) + (1-t)*log(1-p) == log(1-p) + t*(log(p) - log(1-p)).
                # Clamping before the multiply keeps masked zeros exactly 0
                # (no -inf*0 NaN), matching nn.BCELoss semantics.
                log_p = jnp.maximum(jnp.log(p3), _LOG_CLAMP)
                log_1mp = jnp.maximum(jnp.log(1.0 - p3), _LOG_CLAMP)
                pos = log_1mp + t3 * (log_p - log_1mp)
            bce = bce + jnp.sum(pos, axis=0)
            return inter, union, bce

        zeros = jnp.zeros((SUBLANES, LANES), jnp.float32)
        inter, union, bce = lax.fori_loop(
            0, n_chunks, chunk_body, (zeros, zeros, zeros),
            unroll=True if n_chunks <= 4 else False)
        inter_ref[...] += inter
        union_ref[...] += union
        # The BCE elementwise term is -(t*log p + (1-t)*log(1-p)); fold the
        # negation into the accumulator update.
        bce_ref[...] -= bce

    tile_is_full = tile_start + tile_elems <= count

    @pl.when(tile_is_full)
    def _full():
        _accumulate(masked=False)

    @pl.when(jnp.logical_not(tile_is_full))
    def _ragged():
        _accumulate(masked=True)


def dice_bce_loss2(logits, targets, smooth=1.0, dice_weight=0.5, bce_weight=0.5,
                   *, num_cores=None, max_rows_per_tile=4096, max_chunk_rows=256,
                   hard_targets=False, vmem_limit_bytes=48 * 1024 * 1024):
    """Matches DICE_BCE_Loss2.forward(logits, targets) (logits are probabilities)."""
    assert logits.shape == targets.shape
    n = int(logits.size)
    assert n > 0

    if num_cores is None:
        num_cores = _default_num_cores()

    flat_p = jnp.ravel(logits)
    flat_t = jnp.ravel(targets)
    if n % LANES:
        # TODO(synk): stream the flat tail through a 1-D BlockSpec instead; this
        # rare (<128-element) pad still costs one full HBM copy of each stream.
        pad = LANES - n % LANES
        flat_p = jnp.pad(flat_p, (0, pad))
        flat_t = jnp.pad(flat_t, (0, pad))
    rows = flat_p.size // LANES
    p2 = flat_p.reshape(rows, LANES)
    t2 = flat_t.reshape(rows, LANES)

    # Tile sizing: chunk is the in-kernel vreg working set, tile is the DMA'd
    # block (multiple of chunk, as large as allowed to amortize grid overhead).
    row_align = max(_min_sublane_multiple(logits.dtype),
                    _min_sublane_multiple(targets.dtype))
    rows_per_core = pl.cdiv(rows, num_cores)
    chunk = min(max_chunk_rows, _round_up(rows_per_core, row_align))
    chunk = _round_up(chunk, row_align)
    tile_rows = min(_round_up(rows_per_core, chunk),
                    _round_up(max_rows_per_tile, chunk))
    num_tiles = pl.cdiv(rows_per_core, tile_rows)
    last_in_block = pl.cdiv(rows, tile_rows) - 1  # clamp target for OOB blocks

    def in_index_map(c, t, n_ref):
        del n_ref
        # Clamp logical blocks past the end of the array; they are fully masked
        # in-kernel, so re-reading the last valid block is a no-op.
        return (jnp.minimum(c * num_tiles + t, last_in_block), 0)

    def out_index_map(c, t, n_ref):
        del t, n_ref
        return (c, 0, 0)

    p_item = jnp.dtype(logits.dtype).itemsize
    t_item = jnp.dtype(targets.dtype).itemsize
    cost = pl.CostEstimate(
        flops=10 * n,
        transcendentals=(1 if hard_targets else 2) * n,
        bytes_accessed=n * (p_item + t_item),
    )

    acc_shape = jax.ShapeDtypeStruct((num_cores, SUBLANES, LANES), jnp.float32)
    acc_spec = pl.BlockSpec((None, SUBLANES, LANES), out_index_map)
    in_spec = pl.BlockSpec((tile_rows, LANES), in_index_map)

    if num_cores > 1:
        dim_sem = (pltpu.CORE_PARALLEL, pltpu.ARBITRARY)  # shard across v7x TCs
    else:
        dim_sem = (pltpu.ARBITRARY, pltpu.ARBITRARY)

    kernel = functools.partial(
        _partial_sums_kernel,
        tile_rows=tile_rows, chunk_rows=chunk, num_tiles=num_tiles,
        hard_targets=hard_targets)

    count = jnp.array([n], dtype=jnp.int32)

    inter_p, union_p, bce_p = pl.pallas_call(
        kernel,
        out_shape=(acc_shape, acc_shape, acc_shape),
        grid_spec=pltpu.PrefetchScalarGridSpec(
            num_scalar_prefetch=1,
            grid=(num_cores, num_tiles),
            in_specs=[in_spec, in_spec],
            out_specs=(acc_spec, acc_spec, acc_spec),
        ),
        compiler_params=pltpu.CompilerParams(
            dimension_semantics=dim_sem,
            vmem_limit_bytes=vmem_limit_bytes,
        ),
        cost_estimate=cost,
    )(count, p2, t2)

    # Tiny cross-lane / cross-core combine + scalar loss math (outside kernel;
    # O(num_cores * 1024) elements, negligible).
    inter_sum = jnp.sum(inter_p)
    union_sum = jnp.sum(union_p)
    bce_sum = jnp.sum(bce_p)

    intersection = 2.0 * inter_sum + jnp.float32(smooth)
    union = union_sum + jnp.float32(smooth)
    dice_loss = 1.0 - intersection / union
    bce_loss = bce_sum / jnp.float32(n)
    return jnp.float32(dice_weight) * dice_loss + jnp.float32(bce_weight) * bce_loss


def _reference(logits, targets, smooth=1.0, dice_weight=0.5, bce_weight=0.5):
    p = logits.astype(jnp.float32)
    t = targets.astype(jnp.float32)
    intersection = 2.0 * jnp.sum(p * t) + smooth
    union = jnp.sum(p + t) + smooth
    dice_loss = 1.0 - intersection / union
    log_p = jnp.maximum(jnp.log(p), _LOG_CLAMP)
    log_1mp = jnp.maximum(jnp.log(1.0 - p), _LOG_CLAMP)
    bce = -jnp.mean(t * log_p + (1.0 - t) * log_1mp)
    return dice_weight * dice_loss + bce_weight * bce


if __name__ == "__main__":
    key = jax.random.PRNGKey(0)
    k1, k2 = jax.random.split(key)
    # NCHW-style inputs: batch=2, channels=4, spatial=16x16.
    shape = (2, 4, 16, 16)
    # logits are probabilities (nn.BCELoss expects values in [0, 1]).
    logits = jax.nn.sigmoid(jax.random.normal(k1, shape, dtype=jnp.float32))
    targets = (jax.random.uniform(k2, shape) > 0.5).astype(jnp.float32)

    ref = _reference(logits, targets)

    out = dice_bce_loss2(logits, targets)
    out = jax.block_until_ready(out)
    assert jnp.allclose(out, ref, rtol=1e-5, atol=1e-5), (out, ref)

    # Opt-in single-log path (valid here because the demo targets are {0,1}).
    out_hard = dice_bce_loss2(logits, targets, hard_targets=True)
    out_hard = jax.block_until_ready(out_hard)
    assert jnp.allclose(out_hard, ref, rtol=1e-5, atol=1e-5), (out_hard, ref)

    print("KERNEL_OK")
</pallas_src>

<mosaic_0001>
module attributes {stable_mosaic.version = 11 : i64} {
  func.func @_partial_sums_kernel(%arg0: i32, %arg1: i32, %arg2: memref<1xi32, #tpu.memory_space<smem>>, %arg3: memref<16x128xf32, #tpu.memory_space<vmem>>, %arg4: memref<16x128xf32, #tpu.memory_space<vmem>>, %arg5: memref<1x8x128xf32, #tpu.memory_space<vmem>>, %arg6: memref<1x8x128xf32, #tpu.memory_space<vmem>>, %arg7: memref<1x8x128xf32, #tpu.memory_space<vmem>>) attributes {dimension_semantics = [#tpu.dimension_semantics<arbitrary>, #tpu.dimension_semantics<arbitrary>], iteration_bounds = array<i64: 1, 1>, scalar_prefetch = 1 : i64, scratch_operands = 0 : i64, tpu.core_type = #tpu.core_type<tc>, window_params = [{transform_indices = @transform_0, window_bounds = array<i64: 16, 128>}, {transform_indices = @transform_1, window_bounds = array<i64: 16, 128>}, {transform_indices = @transform_2, window_bounds = array<i64: 1, 8, 128>}, {transform_indices = @transform_3, window_bounds = array<i64: 1, 8, 128>}, {transform_indices = @transform_4, window_bounds = array<i64: 1, 8, 128>}]} {
    %c0_i32 = arith.constant 0 : i32
    %0 = arith.cmpi eq, %arg1, %c0_i32 : i32
    %1 = arith.extui %0 : i1 to i32
    %c0_i32_0 = arith.constant 0 : i32
    %2 = arith.cmpi ne, %1, %c0_i32_0 : i32
    scf.if %2 {
      %cst = arith.constant 0.000000e+00 : f32
      %14 = vector.broadcast %cst : f32 to vector<8x128xf32>
      %c0_4 = arith.constant 0 : index
      %c0_5 = arith.constant 0 : index
      %c0_6 = arith.constant 0 : index
      %15 = vector.load %arg5[%c0_4, %c0_5, %c0_6] : memref<1x8x128xf32, #tpu.memory_space<vmem>>, vector<1x8x128xf32>
      %16 = vector.shape_cast %15 : vector<1x8x128xf32> to vector<8x128xf32>
      %17 = vector.shape_cast %14 : vector<8x128xf32> to vector<1x8x128xf32>
      tpu.vector_store %arg5[%c0_4, %c0_5, %c0_6], %17 {strides = array<i32>} : memref<1x8x128xf32, #tpu.memory_space<vmem>>, vector<1x8x128xf32>,
      %cst_7 = arith.constant 0.000000e+00 : f32
      %18 = vector.broadcast %cst_7 : f32 to vector<8x128xf32>
      %c0_8 = arith.constant 0 : index
      %c0_9 = arith.constant 0 : index
      %c0_10 = arith.constant 0 : index
      %19 = vector.load %arg6[%c0_8, %c0_9, %c0_10] : memref<1x8x128xf32, #tpu.memory_space<vmem>>, vector<1x8x128xf32>
      %20 = vector.shape_cast %19 : vector<1x8x128xf32> to vector<8x128xf32>
      %21 = vector.shape_cast %18 : vector<8x128xf32> to vector<1x8x128xf32>
      tpu.vector_store %arg6[%c0_8, %c0_9, %c0_10], %21 {strides = array<i32>} : memref<1x8x128xf32, #tpu.memory_space<vmem>>, vector<1x8x128xf32>,
      %cst_11 = arith.constant 0.000000e+00 : f32
      %22 = vector.broadcast %cst_11 : f32 to vector<8x128xf32>
      %c0_12 = arith.constant 0 : index
      %c0_13 = arith.constant 0 : index
      %c0_14 = arith.constant 0 : index
      %23 = vector.load %arg7[%c0_12, %c0_13, %c0_14] : memref<1x8x128xf32, #tpu.memory_space<vmem>>, vector<1x8x128xf32>
      %24 = vector.shape_cast %23 : vector<1x8x128xf32> to vector<8x128xf32>
      %25 = vector.shape_cast %22 : vector<8x128xf32> to vector<1x8x128xf32>
      tpu.vector_store %arg7[%c0_12, %c0_13, %c0_14], %25 {strides = array<i32>} : memref<1x8x128xf32, #tpu.memory_space<vmem>>, vector<1x8x128xf32>,
    } else {
    }
    %c0 = arith.constant 0 : index
    %3 = memref.load %arg2[%c0] : memref<1xi32, #tpu.memory_space<smem>>
    %c1_i32 = arith.constant 1 : i32
    %4 = arith.muli %arg0, %c1_i32 : i32
    %5 = arith.addi %4, %arg1 : i32
    %c2048_i32 = arith.constant 2048 : i32
    %6 = arith.muli %5, %c2048_i32 : i32
    %c2048_i32_1 = arith.constant 2048 : i32
    %7 = arith.addi %6, %c2048_i32_1 : i32
    %8 = arith.cmpi sle, %7, %3 : i32
    %9 = arith.extui %8 : i1 to i32
    %c0_i32_2 = arith.constant 0 : i32
    %10 = arith.cmpi ne, %9, %c0_i32_2 : i32
    scf.if %10 {
      %cst = arith.constant 0.000000e+00 : f32
      %14 = vector.broadcast %cst : f32 to vector<8x128xf32>
      %c0_i32_4 = arith.constant 0 : i32
      %c16_i32 = arith.constant 16 : i32
      %15 = arith.muli %c0_i32_4, %c16_i32 : i32
      %16 = tpu.assume_multiple %15, 16 : i32
      %17 = arith.index_cast %16 : i32 to index
      %c0_5 = arith.constant 0 : index
      %18 = vector.load %arg3[%17, %c0_5] : memref<16x128xf32, #tpu.memory_space<vmem>>, vector<16x128xf32>
      %19 = arith.index_cast %16 : i32 to index
      %c0_6 = arith.constant 0 : index
      %20 = vector.load %arg4[%19, %c0_6] : memref<16x128xf32, #tpu.memory_space<vmem>>, vector<16x128xf32>
      %21 = vector.shape_cast %18 : vector<16x128xf32> to vector<2x8x128xf32>
      %22 = vector.shape_cast %20 : vector<16x128xf32> to vector<2x8x128xf32>
      %23 = arith.mulf %21, %22 : vector<2x8x128xf32>
      %cst_7 = arith.constant dense<0.000000e+00> : vector<8x128xf32>
      %24 = vector.multi_reduction <add>, %23, %cst_7 [0] : vector<2x8x128xf32> to vector<8x128xf32>
      %25 = arith.addf %14, %24 : vector<8x128xf32>
      %26 = arith.addf %21, %22 : vector<2x8x128xf32>
      %cst_8 = arith.constant dense<0.000000e+00> : vector<8x128xf32>
      %27 = vector.multi_reduction <add>, %26, %cst_8 [0] : vector<2x8x128xf32> to vector<8x128xf32>
      %28 = arith.addf %14, %27 : vector<8x128xf32>
      %29 = math.log %21 : vector<2x8x128xf32>
      %cst_9 = arith.constant -1.000000e+02 : f32
      %30 = vector.broadcast %cst_9 : f32 to vector<2x8x128xf32>
      %31 = arith.maximumf %29, %30 : vector<2x8x128xf32>
      %cst_10 = arith.constant 1.000000e+00 : f32
      %32 = vector.broadcast %cst_10 : f32 to vector<2x8x128xf32>
      %33 = arith.subf %32, %21 : vector<2x8x128xf32>
      %34 = math.log %33 : vector<2x8x128xf32>
      %cst_11 = arith.constant -1.000000e+02 : f32
      %35 = vector.broadcast %cst_11 : f32 to vector<2x8x128xf32>
      %36 = arith.maximumf %34, %35 : vector<2x8x128xf32>
      %37 = arith.subf %31, %36 : vector<2x8x128xf32>
      %38 = arith.mulf %22, %37 : vector<2x8x128xf32>
      %39 = arith.addf %36, %38 : vector<2x8x128xf32>
      %cst_12 = arith.constant dense<0.000000e+00> : vector<8x128xf32>
      %40 = vector.multi_reduction <add>, %39, %cst_12 [0] : vector<2x8x128xf32> to vector<8x128xf32>
      %41 = arith.addf %14, %40 : vector<8x128xf32>
      %c1_i32_13 = arith.constant 1 : i32
      %c0_14 = arith.constant 0 : index
      %c0_15 = arith.constant 0 : index
      %c0_16 = arith.constant 0 : index
      %42 = vector.load %arg5[%c0_14, %c0_15, %c0_16] : memref<1x8x128xf32, #tpu.memory_space<vmem>>, vector<1x8x128xf32>
      %43 = vector.shape_cast %42 : vector<1x8x128xf32> to vector<8x128xf32>
      %44 = arith.addf %43, %25 : vector<8x128xf32>
      %c0_17 = arith.constant 0 : index
      %c0_18 = arith.constant 0 : index
      %c0_19 = arith.constant 0 : index
      %45 = vector.load %arg5[%c0_17, %c0_18, %c0_19] : memref<1x8x128xf32, #tpu.memory_space<vmem>>, vector<1x8x128xf32>
      %46 = vector.shape_cast %45 : vector<1x8x128xf32> to vector<8x128xf32>
      %47 = vector.shape_cast %44 : vector<8x128xf32> to vector<1x8x128xf32>
      tpu.vector_store %arg5[%c0_17, %c0_18, %c0_19], %47 {strides = array<i32>} : memref<1x8x128xf32, #tpu.memory_space<vmem>>, vector<1x8x128xf32>,
      %c0_20 = arith.constant 0 : index
      %c0_21 = arith.constant 0 : index
      %c0_22 = arith.constant 0 : index
      %48 = vector.load %arg6[%c0_20, %c0_21, %c0_22] : memref<1x8x128xf32, #tpu.memory_space<vmem>>, vector<1x8x128xf32>
      %49 = vector.shape_cast %48 : vector<1x8x128xf32> to vector<8x128xf32>
      %50 = arith.addf %49, %28 : vector<8x128xf32>
      %c0_23 = arith.constant 0 : index
      %c0_24 = arith.constant 0 : index
      %c0_25 = arith.constant 0 : index
      %51 = vector.load %arg6[%c0_23, %c0_24, %c0_25] : memref<1x8x128xf32, #tpu.memory_space<vmem>>, vector<1x8x128xf32>
      %52 = vector.shape_cast %51 : vector<1x8x128xf32> to vector<8x128xf32>
      %53 = vector.shape_cast %50 : vector<8x128xf32> to vector<1x8x128xf32>
      tpu.vector_store %arg6[%c0_23, %c0_24, %c0_25], %53 {strides = array<i32>} : memref<1x8x128xf32, #tpu.memory_space<vmem>>, vector<1x8x128xf32>,
      %c0_26 = arith.constant 0 : index
      %c0_27 = arith.constant 0 : index
      %c0_28 = arith.constant 0 : index
      %54 = vector.load %arg7[%c0_26, %c0_27, %c0_28] : memref<1x8x128xf32, #tpu.memory_space<vmem>>, vector<1x8x128xf32>
      %55 = vector.shape_cast %54 : vector<1x8x128xf32> to vector<8x128xf32>
      %56 = arith.subf %55, %41 : vector<8x128xf32>
      %c0_29 = arith.constant 0 : index
      %c0_30 = arith.constant 0 : index
      %c0_31 = arith.constant 0 : index
      %57 = vector.load %arg7[%c0_29, %c0_30, %c0_31] : memref<1x8x128xf32, #tpu.memory_space<vmem>>, vector<1x8x128xf32>
      %58 = vector.shape_cast %57 : vector<1x8x128xf32> to vector<8x128xf32>
      %59 = vector.shape_cast %56 : vector<8x128xf32> to vector<1x8x128xf32>
      tpu.vector_store %arg7[%c0_29, %c0_30, %c0_31], %59 {strides = array<i32>} : memref<1x8x128xf32, #tpu.memory_space<vmem>>, vector<1x8x128xf32>,
    } else {
    }
    %true = arith.constant true
    %11 = arith.xori %8, %true : i1
    %12 = arith.extui %11 : i1 to i32
    %c0_i32_3 = arith.constant 0 : i32
    %13 = arith.cmpi ne, %12, %c0_i32_3 : i32
    scf.if %13 {
      %cst = arith.constant 0.000000e+00 : f32
      %14 = vector.broadcast %cst : f32 to vector<8x128xf32>
      %c0_i32_4 = arith.constant 0 : i32
      %c16_i32 = arith.constant 16 : i32
      %15 = arith.muli %c0_i32_4, %c16_i32 : i32
      %16 = tpu.assume_multiple %15, 16 : i32
      %17 = arith.index_cast %16 : i32 to index
      %c0_5 = arith.constant 0 : index
      %18 = vector.load %arg3[%17, %c0_5] : memref<16x128xf32, #tpu.memory_space<vmem>>, vector<16x128xf32>
      %19 = arith.index_cast %16 : i32 to index
      %c0_6 = arith.constant 0 : index
      %20 = vector.load %arg4[%19, %c0_6] : memref<16x128xf32, #tpu.memory_space<vmem>>, vector<16x128xf32>
      %21 = tpu.iota {dimensions = array<i32: 0>} : vector<16x128xi32>
      %22 = tpu.iota {dimensions = array<i32: 1>} : vector<16x128xi32>
      %23 = vector.broadcast %16 : i32 to vector<16x128xi32>
      %24 = arith.addi %23, %21 : vector<16x128xi32>
      %c128_i32 = arith.constant 128 : i32
      %25 = vector.broadcast %c128_i32 : i32 to vector<16x128xi32>
      %26 = arith.muli %24, %25 : vector<16x128xi32>
      %27 = vector.broadcast %6 : i32 to vector<16x128xi32>
      %28 = arith.addi %27, %26 : vector<16x128xi32>
      %29 = arith.addi %28, %22 : vector<16x128xi32>
      %30 = vector.broadcast %3 : i32 to vector<16x128xi32>
      %31 = arith.cmpi slt, %29, %30 : vector<16x128xi32>
      %cst_7 = arith.constant 0.000000e+00 : f32
      %32 = vector.broadcast %cst_7 : f32 to vector<16x128xf32>
      %33 = arith.select %31, %18, %32 : vector<16x128xi1>, vector<16x128xf32>
      %cst_8 = arith.constant 0.000000e+00 : f32
      %34 = vector.broadcast %cst_8 : f32 to vector<16x128xf32>
      %35 = arith.select %31, %20, %34 : vector<16x128xi1>, vector<16x128xf32>
      %36 = vector.shape_cast %33 : vector<16x128xf32> to vector<2x8x128xf32>
      %37 = vector.shape_cast %35 : vector<16x128xf32> to vector<2x8x128xf32>
      %38 = arith.mulf %36, %37 : vector<2x8x128xf32>
      %cst_9 = arith.constant dense<0.000000e+00> : vector<8x128xf32>
      %39 = vector.multi_reduction <add>, %38, %cst_9 [0] : vector<2x8x128xf32> to vector<8x128xf32>
      %40 = arith.addf %14, %39 : vector<8x128xf32>
      %41 = arith.addf %36, %37 : vector<2x8x128xf32>
      %cst_10 = arith.constant dense<0.000000e+00> : vector<8x128xf32>
      %42 = vector.multi_reduction <add>, %41, %cst_10 [0] : vector<2x8x128xf32> to vector<8x128xf32>
      %43 = arith.addf %14, %42 : vector<8x128xf32>
      %44 = math.log %36 : vector<2x8x128xf32>
      %cst_11 = arith.constant -1.000000e+02 : f32
      %45 = vector.broadcast %cst_11 : f32 to vector<2x8x128xf32>
      %46 = arith.maximumf %44, %45 : vector<2x8x128xf32>
      %cst_12 = arith.constant 1.000000e+00 : f32
      %47 = vector.broadcast %cst_12 : f32 to vector<2x8x128xf32>
      %48 = arith.subf %47, %36 : vector<2x8x128xf32>
      %49 = math.log %48 : vector<2x8x128xf32>
      %cst_13 = arith.constant -1.000000e+02 : f32
      %50 = vector.broadcast %cst_13 : f32 to vector<2x8x128xf32>
      %51 = arith.maximumf %49, %50 : vector<2x8x128xf32>
      %52 = arith.subf %46, %51 : vector<2x8x128xf32>
      %53 = arith.mulf %37, %52 : vector<2x8x128xf32>
      %54 = arith.addf %51, %53 : vector<2x8x128xf32>
      %cst_14 = arith.constant dense<0.000000e+00> : vector<8x128xf32>
      %55 = vector.multi_reduction <add>, %54, %cst_14 [0] : vector<2x8x128xf32> to vector<8x128xf32>
      %56 = arith.addf %14, %55 : vector<8x128xf32>
      %c1_i32_15 = arith.constant 1 : i32
      %c0_16 = arith.constant 0 : index
      %c0_17 = arith.constant 0 : index
      %c0_18 = arith.constant 0 : index
      %57 = vector.load %arg5[%c0_16, %c0_17, %c0_18] : memref<1x8x128xf32, #tpu.memory_space<vmem>>, vector<1x8x128xf32>
      %58 = vector.shape_cast %57 : vector<1x8x128xf32> to vector<8x128xf32>
      %59 = arith.addf %58, %40 : vector<8x128xf32>
      %c0_19 = arith.constant 0 : index
      %c0_20 = arith.constant 0 : index
      %c0_21 = arith.constant 0 : index
      %60 = vector.load %arg5[%c0_19, %c0_20, %c0_21] : memref<1x8x128xf32, #tpu.memory_space<vmem>>, vector<1x8x128xf32>
      %61 = vector.shape_cast %60 : vector<1x8x128xf32> to vector<8x128xf32>
      %62 = vector.shape_cast %59 : vector<8x128xf32> to vector<1x8x128xf32>
      tpu.vector_store %arg5[%c0_19, %c0_20, %c0_21], %62 {strides = array<i32>} : memref<1x8x128xf32, #tpu.memory_space<vmem>>, vector<1x8x128xf32>,
      %c0_22 = arith.constant 0 : index
      %c0_23 = arith.constant 0 : index
      %c0_24 = arith.constant 0 : index
      %63 = vector.load %arg6[%c0_22, %c0_23, %c0_24] : memref<1x8x128xf32, #tpu.memory_space<vmem>>, vector<1x8x128xf32>
      %64 = vector.shape_cast %63 : vector<1x8x128xf32> to vector<8x128xf32>
      %65 = arith.addf %64, %43 : vector<8x128xf32>
      %c0_25 = arith.constant 0 : index
      %c0_26 = arith.constant 0 : index
      %c0_27 = arith.constant 0 : index
      %66 = vector.load %arg6[%c0_25, %c0_26, %c0_27] : memref<1x8x128xf32, #tpu.memory_space<vmem>>, vector<1x8x128xf32>
      %67 = vector.shape_cast %66 : vector<1x8x128xf32> to vector<8x128xf32>
      %68 = vector.shape_cast %65 : vector<8x128xf32> to vector<1x8x128xf32>
      tpu.vector_store %arg6[%c0_25, %c0_26, %c0_27], %68 {strides = array<i32>} : memref<1x8x128xf32, #tpu.memory_space<vmem>>, vector<1x8x128xf32>,
      %c0_28 = arith.constant 0 : index
      %c0_29 = arith.constant 0 : index
      %c0_30 = arith.constant 0 : index
      %69 = vector.load %arg7[%c0_28, %c0_29, %c0_30] : memref<1x8x128xf32, #tpu.memory_space<vmem>>, vector<1x8x128xf32>
      %70 = vector.shape_cast %69 : vector<1x8x128xf32> to vector<8x128xf32>
      %71 = arith.subf %70, %56 : vector<8x128xf32>
      %c0_31 = arith.constant 0 : index
      %c0_32 = arith.constant 0 : index
      %c0_33 = arith.constant 0 : index
      %72 = vector.load %arg7[%c0_31, %c0_32, %c0_33] : memref<1x8x128xf32, #tpu.memory_space<vmem>>, vector<1x8x128xf32>
      %73 = vector.shape_cast %72 : vector<1x8x128xf32> to vector<8x128xf32>
      %74 = vector.shape_cast %71 : vector<8x128xf32> to vector<1x8x128xf32>
      tpu.vector_store %arg7[%c0_31, %c0_32, %c0_33], %74 {strides = array<i32>} : memref<1x8x128xf32, #tpu.memory_space<vmem>>, vector<1x8x128xf32>,
    } else {
    }
    return
  }
  func.func @transform_0(%arg0: i32, %arg1: i32, %arg2: memref<1xi32, #tpu.memory_space<smem>>) -> (i32, i32) {
    %c1_i32 = arith.constant 1 : i32
    %0 = arith.muli %arg0, %c1_i32 : i32
    %1 = arith.addi %0, %arg1 : i32
    %c0_i32 = arith.constant 0 : i32
    %2 = arith.minsi %1, %c0_i32 : i32
    %c0_i32_0 = arith.constant 0 : i32
    %c0_i32_1 = arith.constant 0 : i32
    return %2, %c0_i32_0 : i32, i32
  }
  func.func @transform_1(%arg0: i32, %arg1: i32, %arg2: memref<1xi32, #tpu.memory_space<smem>>) -> (i32, i32) {
    %c1_i32 = arith.constant 1 : i32
    %0 = arith.muli %arg0, %c1_i32 : i32
    %1 = arith.addi %0, %arg1 : i32
    %c0_i32 = arith.constant 0 : i32
    %2 = arith.minsi %1, %c0_i32 : i32
    %c0_i32_0 = arith.constant 0 : i32
    %c0_i32_1 = arith.constant 0 : i32
    return %2, %c0_i32_0 : i32, i32
  }
  func.func @transform_2(%arg0: i32, %arg1: i32, %arg2: memref<1xi32, #tpu.memory_space<smem>>) -> (i32, i32, i32) {
    %c0_i32 = arith.constant 0 : i32
    %c0_i32_0 = arith.constant 0 : i32
    %c0_i32_1 = arith.constant 0 : i32
    return %arg0, %c0_i32, %c0_i32_0 : i32, i32, i32
  }
  func.func @transform_3(%arg0: i32, %arg1: i32, %arg2: memref<1xi32, #tpu.memory_space<smem>>) -> (i32, i32, i32) {
    %c0_i32 = arith.constant 0 : i32
    %c0_i32_0 = arith.constant 0 : i32
    %c0_i32_1 = arith.constant 0 : i32
    return %arg0, %c0_i32, %c0_i32_0 : i32, i32, i32
  }
  func.func @transform_4(%arg0: i32, %arg1: i32, %arg2: memref<1xi32, #tpu.memory_space<smem>>) -> (i32, i32, i32) {
    %c0_i32 = arith.constant 0 : i32
    %c0_i32_0 = arith.constant 0 : i32
    %c0_i32_1 = arith.constant 0 : i32
    return %arg0, %c0_i32, %c0_i32_0 : i32, i32, i32
  }
}

</mosaic_0001>

<llo_original>
// kernel: tpu_custom_call.1
$region0: #{tpu_custom_call.1}
  #allocation0 [shape = 'u32[]', space=smem, size = 0x4, offset = 0x4, fixed_abs, tag = 'smem constant byte address 0x4 - core index']
  #allocation1 [shape = 'u32[144,128]{1,0:T(1,128)}', space=vmem, size = 0x12000, scoped, tag = 'internal scratch']
  #allocation2 [shape = 's32[1]{0}', space=sflag, size = 0x4, scoped, tag = 'scoped memory for tpu_custom_call.1']
  #allocation3 [shape = 's32[1]{0:T(128)S(6)}', space=smem, size = 0x200, scoped, tag = 'prefetched SMEM operand 0']
  %s0 = inlined_call_operand.<no memory space> [shape: s32[1], index: 0, kind: input, shape index: {}]
  %s1 = inlined_call_operand.hbm [shape: f32[16,128], index: 1, kind: input, shape index: {}]
  %s2 = inlined_call_operand.hbm [shape: f32[16,128], index: 2, kind: input, shape index: {}]
  %s3 = inlined_call_operand.hbm [shape: f32[1,8,128], index: 3, kind: output, shape index: {0}]
  %s4 = inlined_call_operand.hbm [shape: f32[1,8,128], index: 4, kind: output, shape index: {1}]
  %s5 = inlined_call_operand.hbm [shape: f32[1,8,128], index: 5, kind: output, shape index: {2}]
  %6 = xla_tuple %s3, %s4, %s5
  %s7 = sld [smem:[#allocation0]]
  $region54: #{tpu_custom_call.1} parent=0
    _
  %s9 = ssub.s32 1, %s7
  %s10 = scalar_select 0, %s9, %s7
  %11 = sst [smem:[#allocation3]] %s0
  $region1: #{tpu_custom_call.1} parent=0
    #allocation4 [shape = 'u8[8192]{0}', space=vmem, size = 0x2000, scoped, tag = 'input window, operand 1, single buffered']
    #allocation5 [shape = 's32[1]{0}', space=sflag, size = 0x4, scoped, tag = 'scoped memory for tpu_custom_call.1']
    #allocation6 [shape = 's32[1]{0}', space=sflag, size = 0x4, scoped, tag = 'scoped memory for tpu_custom_call.1']
    #allocation7 [shape = 'u8[8192]{0}', space=vmem, size = 0x2000, scoped, tag = 'input window, operand 2, single buffered']
    #allocation8 [shape = 's32[1]{0}', space=sflag, size = 0x4, scoped, tag = 'scoped memory for tpu_custom_call.1']
    #allocation9 [shape = 'u8[4096]{0}', space=vmem, size = 0x1000, scoped, tag = 'output window, operand 0, single buffered']
    #allocation10 [shape = 'u8[4096]{0}', space=vmem, size = 0x1000, scoped, tag = 'output window, operand 1, single buffered']
    #allocation11 [shape = 's32[1]{0}', space=sflag, size = 0x4, scoped, tag = 'scoped memory for tpu_custom_call.1']
    #allocation12 [shape = 'u8[4096]{0}', space=vmem, size = 0x1000, scoped, tag = 'output window, operand 2, single buffered']
    %12 = vsyncpa [#allocation5], 0
    %13 = vsyncpa [#allocation8], 0
    %14 = vsyncpa [#allocation6], 0
    %15 = vsyncpa [#allocation11], 0
    // Predicated region
    $region2: #{tpu_custom_call.1} parent=1 // pred_check
      _
    $region3: #{tpu_custom_call.1} parent=1 // pred_check_branch
      %17 = sbr.rel (0) target = $region5
    $region4: #{tpu_custom_call.1} parent=1 // pred_region
      %s18 = sadd.s32 0, 0
      %p19 = scmp.lt.s32.totalorder %s18, 0
      %s20 = scalar_select %p19, %s18, 0
      %s21 = smul.u32 2, %s20
      %s23 = ssub.s32 256, 256
      %24 = vsyncadd [#allocation5], %s23
      %s25 = smul.addr %s21, 128
      %s26 = scalar_lea.hbm %s1, %s25
      %s27 = sshll.u32 [#allocation4], 4
      %s28 = int_to_ptr.vmem [resolvable:$true] %s27
      %33 = dma.hbm_to_vmem [thread:$0]  %s26, 256, %s28, [#allocation5], 128, 128, 8
    $region5: #{tpu_custom_call.1} parent=1 // pred_fallthru
      _
    // Predicated region
    $region6: #{tpu_custom_call.1} parent=1 // pred_check
      _
    $region7: #{tpu_custom_call.1} parent=1 // pred_check_branch
      %35 = sbr.rel (0) target = $region9
    $region8: #{tpu_custom_call.1} parent=1 // pred_region
      %s36 = sadd.s32 0, 0
      %p37 = scmp.lt.s32.totalorder %s36, 0
      %s38 = scalar_select %p37, %s36, 0
      %s39 = smul.u32 2, %s38
      %s41 = ssub.s32 256, 256
      %42 = vsyncadd [#allocation8], %s41
      %s43 = smul.addr %s39, 128
      %s44 = scalar_lea.hbm %s2, %s43
      %s45 = sshll.u32 [#allocation7], 4
      %s46 = int_to_ptr.vmem [resolvable:$true] %s45
      %51 = dma.hbm_to_vmem [thread:$0]  %s44, 256, %s46, [#allocation8], 128, 128, 8
    $region9: #{tpu_custom_call.1} parent=1 // pred_fallthru
      _
    // Predicated region
    $region10: #{tpu_custom_call.1} parent=1 // pred_check
      _
    $region11: #{tpu_custom_call.1} parent=1 // pred_check_branch
      %53 = sbr.rel (0) target = $region13
    $region12: #{tpu_custom_call.1} parent=1 // pred_region
      %54 = dma.done [#allocation5], 256
    $region13: #{tpu_custom_call.1} parent=1 // pred_fallthru
      _
    // Predicated region
    $region14: #{tpu_custom_call.1} parent=1 // pred_check
      _
    $region15: #{tpu_custom_call.1} parent=1 // pred_check_branch
      %56 = sbr.rel (0) target = $region17
    $region16: #{tpu_custom_call.1} parent=1 // pred_region
      %57 = dma.done [#allocation8], 256
    $region17: #{tpu_custom_call.1} parent=1 // pred_fallthru
      _
    %s58 = sadd.s32 0, 0
    %p59 = scmp.lt.s32.totalorder %s58, 0
    %s60 = scalar_select %p59, %s58, 0
    %s61 = smul.u32 2, %s60
    %s62 = sadd.s32 0, 0
    %p63 = scmp.lt.s32.totalorder %s62, 0
    %s64 = scalar_select %p63, %s62, 0
    %s65 = smul.u32 2, %s64
    %p66 = scmp.eq.s32.totalorder 0, 0
    // Predicated region
    $region18: #{tpu_custom_call.1} parent=1 // pred_check
      %p67 = pneg %p66
    $region19: #{tpu_custom_call.1} parent=1 // pred_check_branch
      %69 = sbr.rel (%p67) target = $region21
    $region20: #{tpu_custom_call.1} parent=1 // pred_region
      %70 = vst [vmem:[#allocation9] sm:$0xff] 0.0
      %71 = vst [vmem:[#allocation10] sm:$0xff] 0.0
      %72 = vst [vmem:[#allocation12] sm:$0xff] 0.0
    $region21: #{tpu_custom_call.1} parent=1 // pred_fallthru
      _
    %s73 = sld [smem:[#allocation3]]
    %s74 = sadd.s32 0, 0
    %s75 = smul.u32 %s74, 2048
    %s76 = sadd.s32 %s75, 2048
    %p77 = scmp.le.s32.totalorder %s76, %s73
    // Predicated region
    $region22: #{tpu_custom_call.1} parent=1 // pred_check
      %p78 = pneg %p77
    $region23: #{tpu_custom_call.1} parent=1 // pred_check_branch
      %80 = sbr.rel (%p78) target = $region25
    $region24: #{tpu_custom_call.1} parent=1 // pred_region
      %v81 = vld [vmem:[#allocation4] sm:$0xff]
      %v82 = vld [vmem:[#allocation4 + $0x8] sm:$0xff]
      %v83 = vld [vmem:[#allocation7] sm:$0xff]
      %v84 = vld [vmem:[#allocation7 + $0x8] sm:$0xff]
      %v85 = vmul.f32 %v81, %v83
      %v86 = vmul.f32 %v82, %v84
      %v87 = vadd.f32 %v85, %v86
      %v88 = vadd.f32 %v87, 0.0
      %v89 = vadd.f32 %v81, %v83
      %v90 = vadd.f32 %v82, %v84
      %v91 = vadd.f32 %v89, %v90
      %v92 = vadd.f32 %v91, 0.0
      %v93 = vlog2.pop %v81
      %v94 = vmul.f32 %v93, 0.6931472
      %v95 = vlog2.pop %v82
      %v96 = vmul.f32 %v95, 0.6931472
      %v97 = vmax.f32 %v94, -100.0
      %v98 = vmax.f32 %v96, -100.0
      %v99 = vsub.f32 1.0, %v81
      %v100 = vsub.f32 1.0, %v82
      %v101 = vlog2.pop %v99
      %v102 = vmul.f32 %v101, 0.6931472
      %v103 = vlog2.pop %v100
      %v104 = vmul.f32 %v103, 0.6931472
      %v105 = vmax.f32 %v102, -100.0
      %v106 = vmax.f32 %v104, -100.0
      %v107 = vsub.f32 %v97, %v105
      %v108 = vsub.f32 %v98, %v106
      %v109 = vmul.f32 %v83, %v107
      %v110 = vmul.f32 %v84, %v108
      %v111 = vadd.f32 %v105, %v109
      %v112 = vadd.f32 %v106, %v110
      %v113 = vadd.f32 %v111, %v112
      %v114 = vadd.f32 %v113, 0.0
      %v115 = vld [vmem:[#allocation9] sm:$0xff]
      %v116 = vadd.f32 %v115, %v88
      %117 = vst [vmem:[#allocation9] sm:$0xff] %v116
      %v118 = vld [vmem:[#allocation10] sm:$0xff]
      %v119 = vadd.f32 %v118, %v92
      %120 = vst [vmem:[#allocation10] sm:$0xff] %v119
      %v121 = vld [vmem:[#allocation12] sm:$0xff]
      %v122 = vsub.f32 %v121, %v114
      %123 = vst [vmem:[#allocation12] sm:$0xff] %v122
    $region25: #{tpu_custom_call.1} parent=1 // pred_fallthru
      _
    %p124 = scmp.gt.s32.totalorder %s76, %s73
    // Predicated region
    $region26: #{tpu_custom_call.1} parent=1 // pred_check
      %p125 = pneg %p124
    $region27: #{tpu_custom_call.1} parent=1 // pred_check_branch
      %127 = sbr.rel (%p125) target = $region29
    $region28: #{tpu_custom_call.1} parent=1 // pred_region
      %v128 = vld [vmem:[#allocation4] sm:$0xff]
      %v129 = vld [vmem:[#allocation4 + $0x8] sm:$0xff]
      %v130 = vld [vmem:[#allocation7] sm:$0xff]
      %v131 = vld [vmem:[#allocation7 + $0x8] sm:$0xff]
      %v132 = vlaneseq
      %v133 = vshrl.u32 %v132, 7
      %v134 = vadd.s32 %v133, 8
      %v135 = vlaneseq
      %v136 = vand.u32 %v135, 127
      %v137 = vstv 0
      %v138 = vadd.s32 %v137, %v133
      %v139 = vadd.s32 %v137, %v134
      %v140 = vmul.u32 %v138, 128
      %v141 = vmul.u32 %v139, 128
      %v142 = vstv %s75
      %v143 = vadd.s32 %v142, %v140
      %v144 = vadd.s32 %v142, %v141
      %v145 = vadd.s32 %v143, %v136
      %v146 = vadd.s32 %v144, %v136
      %v147 = vstv %s73
      %vm148 = vcmp.lt.s32.totalorder %v145, %v147
      %vm149 = vcmp.lt.s32.totalorder %v146, %v147
      %v150 = vsel %vm148, %v128, 0.0
      %v151 = vsel %vm149, %v129, 0.0
      %v152 = vsel %vm148, %v130, 0.0
      %v153 = vsel %vm149, %v131, 0.0
      %v154 = vmul.f32 %v150, %v152
      %v155 = vmul.f32 %v151, %v153
      %v156 = vadd.f32 %v154, %v155
      %v157 = vadd.f32 %v156, 0.0
      %v158 = vadd.f32 %v150, %v152
      %v159 = vadd.f32 %v151, %v153
      %v160 = vadd.f32 %v158, %v159
      %v161 = vadd.f32 %v160, 0.0
      %v162 = vlog2.pop %v150
      %v163 = vmul.f32 %v162, 0.6931472
      %v164 = vlog2.pop %v151
      %v165 = vmul.f32 %v164, 0.6931472
      %v166 = vmax.f32 %v163, -100.0
      %v167 = vmax.f32 %v165, -100.0
      %v168 = vsub.f32 1.0, %v150
      %v169 = vsub.f32 1.0, %v151
      %v170 = vlog2.pop %v168
      %v171 = vmul.f32 %v170, 0.6931472
      %v172 = vlog2.pop %v169
      %v173 = vmul.f32 %v172, 0.6931472
      %v174 = vmax.f32 %v171, -100.0
      %v175 = vmax.f32 %v173, -100.0
      %v176 = vsub.f32 %v166, %v174
      %v177 = vsub.f32 %v167, %v175
      %v178 = vmul.f32 %v152, %v176
      %v179 = vmul.f32 %v153, %v177
      %v180 = vadd.f32 %v174, %v178
      %v181 = vadd.f32 %v175, %v179
      %v182 = vadd.f32 %v180, %v181
      %v183 = vadd.f32 %v182, 0.0
      %v184 = vld [vmem:[#allocation9] sm:$0xff]
      %v185 = vadd.f32 %v184, %v157
      %186 = vst [vmem:[#allocation9] sm:$0xff] %v185
      %v187 = vld [vmem:[#allocation10] sm:$0xff]
      %v188 = vadd.f32 %v187, %v161
      %189 = vst [vmem:[#allocation10] sm:$0xff] %v188
      %v190 = vld [vmem:[#allocation12] sm:$0xff]
      %v191 = vsub.f32 %v190, %v183
      %192 = vst [vmem:[#allocation12] sm:$0xff] %v191
    $region29: #{tpu_custom_call.1} parent=1 // pred_fallthru
      _
    // Predicated region
    $region30: #{tpu_custom_call.1} parent=1 // pred_check
      _
    $region31: #{tpu_custom_call.1} parent=1 // pred_check_branch
      %194 = sbr.rel (0) target = $region33
    $region32: #{tpu_custom_call.1} parent=1 // pred_region
      %s196 = ssub.s32 128, 128
      %197 = vsyncadd [#allocation6], %s196
      %s199 = sshll.u32 [#allocation9], 4
      %s200 = int_to_ptr.vmem [resolvable:$true] %s199
      %202 = dma.vmem_to_hbm [thread:$0]  %s200, 128, %s3, [#allocation6]
    $region33: #{tpu_custom_call.1} parent=1 // pred_fallthru
      _
    // Predicated region
    $region34: #{tpu_custom_call.1} parent=1 // pred_check
      _
    $region35: #{tpu_custom_call.1} parent=1 // pred_check_branch
      %204 = sbr.rel (0) target = $region37
    $region36: #{tpu_custom_call.1} parent=1 // pred_region
      %s206 = ssub.s32 128, 128
      %207 = vsyncadd [#allocation11], %s206
      %s209 = sshll.u32 [#allocation10], 4
      %s210 = int_to_ptr.vmem [resolvable:$true] %s209
      %212 = dma.vmem_to_hbm [thread:$0]  %s210, 128, %s4, [#allocation11]
    $region37: #{tpu_custom_call.1} parent=1 // pred_fallthru
      _
    // Predicated region
    $region38: #{tpu_custom_call.1} parent=1 // pred_check
      _
    $region39: #{tpu_custom_call.1} parent=1 // pred_check_branch
      %214 = sbr.rel (0) target = $region41
    $region40: #{tpu_custom_call.1} parent=1 // pred_region
      %s216 = ssub.s32 128, 128
      %217 = vsyncadd [#allocation11], %s216
      %s219 = sshll.u32 [#allocation12], 4
      %s220 = int_to_ptr.vmem [resolvable:$true] %s219
      %222 = dma.vmem_to_hbm [thread:$0]  %s220, 128, %s5, [#allocation11]
    $region41: #{tpu_custom_call.1} parent=1 // pred_fallthru
      _
    // Predicated region
    $region42: #{tpu_custom_call.1} parent=1 // pred_check
      _
    $region43: #{tpu_custom_call.1} parent=1 // pred_check_branch
      %224 = sbr.rel (0) target = $region45
    $region44: #{tpu_custom_call.1} parent=1 // pred_region
      %225 = dma.done [#allocation6], 128
    $region45: #{tpu_custom_call.1} parent=1 // pred_fallthru
      _
    // Predicated region
    $region46: #{tpu_custom_call.1} parent=1 // pred_check
      _
    $region47: #{tpu_custom_call.1} parent=1 // pred_check_branch
      %227 = sbr.rel (0) target = $region49
    $region48: #{tpu_custom_call.1} parent=1 // pred_region
      %228 = dma.done [#allocation11], 128
    $region49: #{tpu_custom_call.1} parent=1 // pred_fallthru
      _
    // Predicated region
    $region50: #{tpu_custom_call.1} parent=1 // pred_check
      _
    $region51: #{tpu_custom_call.1} parent=1 // pred_check_branch
      %230 = sbr.rel (0) target = $region53
    $region52: #{tpu_custom_call.1} parent=1 // pred_region
      %231 = dma.done [#allocation11], 128
    $region53: #{tpu_custom_call.1} parent=1 // pred_fallthru
      _
    %232 = vsyncpa [#allocation5], 1
    %233 = vsyncpa [#allocation8], 1
    %234 = vsyncpa [#allocation6], 1
    %235 = vsyncpa [#allocation11], 1

</llo_original>
